<compile_context>
chip_gen: v7x
topology: tpu7x:2x2x1
jax: 0.10.0
libtpu: 0.0.40
codegen_flags: <defaults>
</compile_context>

<pallas_src>
import jax
import jax.numpy as jnp
from jax.experimental import pallas as pl
from jax.experimental.pallas import tpu as pltpu

LANE = 128


def _round_up(x, m):
    return (x + m - 1) // m * m


def mlp_kernel(x_ref, w1_ref, b1_ref, w2_ref, b2_ref,
               w3_ref, b3_ref, w4_ref, b4_ref, out_ref):
    # Layer 1: bf16 MXU inputs, f32 accumulation; bias + ReLU on the VPU in f32.
    h = jnp.dot(x_ref[...], w1_ref[...], preferred_element_type=jnp.float32)
    h = jnp.maximum(h + b1_ref[...], 0.0)

    # Layer 2
    h = jnp.dot(h.astype(jnp.bfloat16), w2_ref[...],
                preferred_element_type=jnp.float32)
    h = jnp.maximum(h + b2_ref[...], 0.0)

    # Layer 3
    h = jnp.dot(h.astype(jnp.bfloat16), w3_ref[...],
                preferred_element_type=jnp.float32)
    h = jnp.maximum(h + b3_ref[...], 0.0)

    # Output layer (no activation); columns already padded to a lane multiple,
    # so this store is lane-dense (unmasked vst).
    y = jnp.dot(h.astype(jnp.bfloat16), w4_ref[...],
                preferred_element_type=jnp.float32)
    y = y + b4_ref[...]

    out_ref[...] = y.astype(out_ref.dtype)


def mlp_forward(x, params, *, block_batch=256):
    """x: (batch, state_n) float32.  params: dict of f32 weights/biases."""
    batch, state_n = x.shape
    mid_n = params["w1"].shape[1]
    action_n = params["w4"].shape[1]

    # Batch tile: multiple of 8 (sublane granularity), capped at block_batch.
    tb = min(block_batch, _round_up(batch, 8))
    b_pad = _round_up(batch, tb)
    out_pad = _round_up(action_n, LANE)   # lane-dense output

    x_p = x if b_pad == batch else jnp.pad(x, ((0, b_pad - batch), (0, 0)))

    # bf16 MXU operands; biases stay f32 (VPU work in f32).
    x_bf = x_p.astype(jnp.bfloat16)
    w1 = params["w1"].astype(jnp.bfloat16)
    w2 = params["w2"].astype(jnp.bfloat16)
    w3 = params["w3"].astype(jnp.bfloat16)
    w4 = jnp.pad(params["w4"],
                 ((0, 0), (0, out_pad - action_n))).astype(jnp.bfloat16)
    b1 = params["b1"].astype(jnp.float32)
    b2 = params["b2"].astype(jnp.float32)
    b3 = params["b3"].astype(jnp.float32)
    b4 = jnp.pad(params["b4"],
                 ((0, 0), (0, out_pad - action_n))).astype(jnp.float32)

    grid = (b_pad // tb,)

    x_spec = pl.BlockSpec((tb, state_n), lambda i: (i, 0))
    out_spec = pl.BlockSpec((tb, out_pad), lambda i: (i, 0))
    # Weights/biases: full-array blocks, same block every step -> VMEM-resident.
    resident = lambda a: pl.BlockSpec(a.shape, lambda i: (0, 0))

    flops = 2 * b_pad * (state_n * mid_n + 2 * mid_n * mid_n + mid_n * out_pad)
    bytes_accessed = (
        x_bf.size * 2
        + (w1.size + w2.size + w3.size + w4.size) * 2
        + (b1.size + b2.size + b3.size + b4.size) * 4
        + b_pad * out_pad * 4)

    out = pl.pallas_call(
        mlp_kernel,
        out_shape=jax.ShapeDtypeStruct((b_pad, out_pad), jnp.float32),
        grid=grid,
        in_specs=[x_spec,
                  resident(w1), resident(b1),
                  resident(w2), resident(b2),
                  resident(w3), resident(b3),
                  resident(w4), resident(b4)],
        out_specs=out_spec,
        compiler_params=pltpu.CompilerParams(
            dimension_semantics=("parallel",)),
        cost_estimate=pl.CostEstimate(
            flops=flops, transcendentals=0, bytes_accessed=bytes_accessed),
    )(x_bf, w1, b1, w2, b2, w3, b3, w4, b4)

    return out[:batch, :action_n]


def init_params(key, state_n, action_n, mid_n):
    """Mimics PyTorch nn.Linear default init: U(-1/sqrt(fan_in), 1/sqrt(fan_in))."""
    dims = [(state_n, mid_n), (mid_n, mid_n), (mid_n, mid_n), (mid_n, action_n)]
    params = {}
    for i, (fan_in, fan_out) in enumerate(dims, start=1):
        key, kw, kb = jax.random.split(key, 3)
        bound = 1.0 / jnp.sqrt(float(fan_in))
        params[f"w{i}"] = jax.random.uniform(
            kw, (fan_in, fan_out), jnp.float32, -bound, bound)
        params[f"b{i}"] = jax.random.uniform(
            kb, (1, fan_out), jnp.float32, -bound, bound)
    return params


def mlp_reference(x, params):
    """Plain-JAX f32 reference for correctness checking."""
    h = jnp.maximum(x @ params["w1"] + params["b1"], 0.0)
    h = jnp.maximum(h @ params["w2"] + params["b2"], 0.0)
    h = jnp.maximum(h @ params["w3"] + params["b3"], 0.0)
    return h @ params["w4"] + params["b4"]


if __name__ == "__main__":
    # LunarLanderContinuous-v2: state_n = 8, action_n = 2; mid_n chosen as 32.
    state_n, action_n, mid_n = 8, 2, 32

    key = jax.random.PRNGKey(0)
    key, kp = jax.random.split(key)
    params = init_params(kp, state_n, action_n, mid_n)

    # Check 1: tiny batch (single grid step, tb == batch).
    key, kx = jax.random.split(key)
    x_small = jax.random.normal(kx, (8, state_n), jnp.float32)
    out_small = jax.block_until_ready(mlp_forward(x_small, params))
    ref_small = mlp_reference(x_small, params)
    assert out_small.shape == (8, action_n)
    assert jnp.allclose(out_small, ref_small, atol=5e-2, rtol=5e-2), \
        "small-batch mismatch vs reference"

    # Check 2: batch that exercises batch tiling + padding (grid of 2 steps).
    key, kx2 = jax.random.split(key)
    x_big = jax.random.normal(kx2, (300, state_n), jnp.float32)
    out_big = jax.block_until_ready(mlp_forward(x_big, params))
    ref_big = mlp_reference(x_big, params)
    assert out_big.shape == (300, action_n)
    assert jnp.allclose(out_big, ref_big, atol=5e-2, rtol=5e-2), \
        "tiled-batch mismatch vs reference"

    print("KERNEL_OK")
</pallas_src>

<mosaic_0001>
module attributes {stable_mosaic.version = 11 : i64} {
  func.func @mlp_kernel(%arg0: i32, %arg1: memref<8x8xbf16, #tpu.memory_space<vmem>>, %arg2: memref<8x32xbf16, #tpu.memory_space<vmem>>, %arg3: memref<1x32xf32, #tpu.memory_space<vmem>>, %arg4: memref<32x32xbf16, #tpu.memory_space<vmem>>, %arg5: memref<1x32xf32, #tpu.memory_space<vmem>>, %arg6: memref<32x32xbf16, #tpu.memory_space<vmem>>, %arg7: memref<1x32xf32, #tpu.memory_space<vmem>>, %arg8: memref<32x128xbf16, #tpu.memory_space<vmem>>, %arg9: memref<1x128xf32, #tpu.memory_space<vmem>>, %arg10: memref<8x128xf32, #tpu.memory_space<vmem>>) attributes {dimension_semantics = [#tpu.dimension_semantics<parallel>], iteration_bounds = array<i64: 1>, scalar_prefetch = 0 : i64, scratch_operands = 0 : i64, tpu.core_type = #tpu.core_type<tc>, window_params = [{transform_indices = @transform_0, window_bounds = array<i64: 8, 8>}, {pipeline_mode = #tpu.pipeline_mode<synchronous>, transform_indices = @transform_1, window_bounds = array<i64: 8, 32>}, {pipeline_mode = #tpu.pipeline_mode<synchronous>, transform_indices = @transform_2, window_bounds = array<i64: 1, 32>}, {pipeline_mode = #tpu.pipeline_mode<synchronous>, transform_indices = @transform_3, window_bounds = array<i64: 32, 32>}, {pipeline_mode = #tpu.pipeline_mode<synchronous>, transform_indices = @transform_4, window_bounds = array<i64: 1, 32>}, {pipeline_mode = #tpu.pipeline_mode<synchronous>, transform_indices = @transform_5, window_bounds = array<i64: 32, 32>}, {pipeline_mode = #tpu.pipeline_mode<synchronous>, transform_indices = @transform_6, window_bounds = array<i64: 1, 32>}, {pipeline_mode = #tpu.pipeline_mode<synchronous>, transform_indices = @transform_7, window_bounds = array<i64: 32, 128>}, {pipeline_mode = #tpu.pipeline_mode<synchronous>, transform_indices = @transform_8, window_bounds = array<i64: 1, 128>}, {transform_indices = @transform_9, window_bounds = array<i64: 8, 128>}]} {
    %c0 = arith.constant 0 : index
    %c0_0 = arith.constant 0 : index
    %0 = vector.load %arg1[%c0, %c0_0] : memref<8x8xbf16, #tpu.memory_space<vmem>>, vector<8x8xbf16>
    %c0_1 = arith.constant 0 : index
    %c0_2 = arith.constant 0 : index
    %1 = vector.load %arg2[%c0_1, %c0_2] : memref<8x32xbf16, #tpu.memory_space<vmem>>, vector<8x32xbf16>
    %cst = arith.constant dense<0.000000e+00> : vector<8x32xf32>
    %2 = tpu.matmul %0, %1, %cst {dimension_numbers = #tpu.dot_dimension_numbers<[1], [0], [0], [1], [0, 0, 1, 1], [], []>} : vector<8x8xbf16>, vector<8x32xbf16>, vector<8x32xf32> -> vector<8x32xf32>
    %c0_3 = arith.constant 0 : index
    %c0_4 = arith.constant 0 : index
    %3 = vector.load %arg3[%c0_3, %c0_4] : memref<1x32xf32, #tpu.memory_space<vmem>>, vector<1x32xf32>
    %4 = vector.broadcast %3 : vector<1x32xf32> to vector<8x32xf32>
    %5 = arith.addf %2, %4 : vector<8x32xf32>
    %cst_5 = arith.constant 0.000000e+00 : f32
    %6 = vector.broadcast %cst_5 : f32 to vector<8x32xf32>
    %7 = arith.maximumf %5, %6 : vector<8x32xf32>
    %8 = arith.truncf %7 : vector<8x32xf32> to vector<8x32xbf16>
    %c0_6 = arith.constant 0 : index
    %c0_7 = arith.constant 0 : index
    %9 = vector.load %arg4[%c0_6, %c0_7] : memref<32x32xbf16, #tpu.memory_space<vmem>>, vector<32x32xbf16>
    %cst_8 = arith.constant dense<0.000000e+00> : vector<8x32xf32>
    %10 = tpu.matmul %8, %9, %cst_8 {dimension_numbers = #tpu.dot_dimension_numbers<[1], [0], [0], [1], [0, 0, 1, 1], [], []>} : vector<8x32xbf16>, vector<32x32xbf16>, vector<8x32xf32> -> vector<8x32xf32>
    %c0_9 = arith.constant 0 : index
    %c0_10 = arith.constant 0 : index
    %11 = vector.load %arg5[%c0_9, %c0_10] : memref<1x32xf32, #tpu.memory_space<vmem>>, vector<1x32xf32>
    %12 = vector.broadcast %11 : vector<1x32xf32> to vector<8x32xf32>
    %13 = arith.addf %10, %12 : vector<8x32xf32>
    %cst_11 = arith.constant 0.000000e+00 : f32
    %14 = vector.broadcast %cst_11 : f32 to vector<8x32xf32>
    %15 = arith.maximumf %13, %14 : vector<8x32xf32>
    %16 = arith.truncf %15 : vector<8x32xf32> to vector<8x32xbf16>
    %c0_12 = arith.constant 0 : index
    %c0_13 = arith.constant 0 : index
    %17 = vector.load %arg6[%c0_12, %c0_13] : memref<32x32xbf16, #tpu.memory_space<vmem>>, vector<32x32xbf16>
    %cst_14 = arith.constant dense<0.000000e+00> : vector<8x32xf32>
    %18 = tpu.matmul %16, %17, %cst_14 {dimension_numbers = #tpu.dot_dimension_numbers<[1], [0], [0], [1], [0, 0, 1, 1], [], []>} : vector<8x32xbf16>, vector<32x32xbf16>, vector<8x32xf32> -> vector<8x32xf32>
    %c0_15 = arith.constant 0 : index
    %c0_16 = arith.constant 0 : index
    %19 = vector.load %arg7[%c0_15, %c0_16] : memref<1x32xf32, #tpu.memory_space<vmem>>, vector<1x32xf32>
    %20 = vector.broadcast %19 : vector<1x32xf32> to vector<8x32xf32>
    %21 = arith.addf %18, %20 : vector<8x32xf32>
    %cst_17 = arith.constant 0.000000e+00 : f32
    %22 = vector.broadcast %cst_17 : f32 to vector<8x32xf32>
    %23 = arith.maximumf %21, %22 : vector<8x32xf32>
    %24 = arith.truncf %23 : vector<8x32xf32> to vector<8x32xbf16>
    %c0_18 = arith.constant 0 : index
    %c0_19 = arith.constant 0 : index
    %25 = vector.load %arg8[%c0_18, %c0_19] : memref<32x128xbf16, #tpu.memory_space<vmem>>, vector<32x128xbf16>
    %cst_20 = arith.constant dense<0.000000e+00> : vector<8x128xf32>
    %26 = tpu.matmul %24, %25, %cst_20 {dimension_numbers = #tpu.dot_dimension_numbers<[1], [0], [0], [1], [0, 0, 1, 1], [], []>} : vector<8x32xbf16>, vector<32x128xbf16>, vector<8x128xf32> -> vector<8x128xf32>
    %c0_21 = arith.constant 0 : index
    %c0_22 = arith.constant 0 : index
    %27 = vector.load %arg9[%c0_21, %c0_22] : memref<1x128xf32, #tpu.memory_space<vmem>>, vector<1x128xf32>
    %28 = vector.broadcast %27 : vector<1x128xf32> to vector<8x128xf32>
    %29 = arith.addf %26, %28 : vector<8x128xf32>
    %c0_23 = arith.constant 0 : index
    %c0_24 = arith.constant 0 : index
    %30 = vector.load %arg10[%c0_23, %c0_24] : memref<8x128xf32, #tpu.memory_space<vmem>>, vector<8x128xf32>
    tpu.vector_store %arg10[%c0_23, %c0_24], %29 {strides = array<i32>} : memref<8x128xf32, #tpu.memory_space<vmem>>, vector<8x128xf32>,
    return
  }
  func.func @transform_0(%arg0: i32) -> (i32, i32) {
    %c0_i32 = arith.constant 0 : i32
    %c0_i32_0 = arith.constant 0 : i32
    return %arg0, %c0_i32 : i32, i32
  }
  func.func @transform_1(%arg0: i32) -> (i32, i32) {
    %c0_i32 = arith.constant 0 : i32
    %c0_i32_0 = arith.constant 0 : i32
    %c0_i32_1 = arith.constant 0 : i32
    return %c0_i32, %c0_i32_0 : i32, i32
  }
  func.func @transform_2(%arg0: i32) -> (i32, i32) {
    %c0_i32 = arith.constant 0 : i32
    %c0_i32_0 = arith.constant 0 : i32
    %c0_i32_1 = arith.constant 0 : i32
    return %c0_i32, %c0_i32_0 : i32, i32
  }
  func.func @transform_3(%arg0: i32) -> (i32, i32) {
    %c0_i32 = arith.constant 0 : i32
    %c0_i32_0 = arith.constant 0 : i32
    %c0_i32_1 = arith.constant 0 : i32
    return %c0_i32, %c0_i32_0 : i32, i32
  }
  func.func @transform_4(%arg0: i32) -> (i32, i32) {
    %c0_i32 = arith.constant 0 : i32
    %c0_i32_0 = arith.constant 0 : i32
    %c0_i32_1 = arith.constant 0 : i32
    return %c0_i32, %c0_i32_0 : i32, i32
  }
  func.func @transform_5(%arg0: i32) -> (i32, i32) {
    %c0_i32 = arith.constant 0 : i32
    %c0_i32_0 = arith.constant 0 : i32
    %c0_i32_1 = arith.constant 0 : i32
    return %c0_i32, %c0_i32_0 : i32, i32
  }
  func.func @transform_6(%arg0: i32) -> (i32, i32) {
    %c0_i32 = arith.constant 0 : i32
    %c0_i32_0 = arith.constant 0 : i32
    %c0_i32_1 = arith.constant 0 : i32
    return %c0_i32, %c0_i32_0 : i32, i32
  }
  func.func @transform_7(%arg0: i32) -> (i32, i32) {
    %c0_i32 = arith.constant 0 : i32
    %c0_i32_0 = arith.constant 0 : i32
    %c0_i32_1 = arith.constant 0 : i32
    return %c0_i32, %c0_i32_0 : i32, i32
  }
  func.func @transform_8(%arg0: i32) -> (i32, i32) {
    %c0_i32 = arith.constant 0 : i32
    %c0_i32_0 = arith.constant 0 : i32
    %c0_i32_1 = arith.constant 0 : i32
    return %c0_i32, %c0_i32_0 : i32, i32
  }
  func.func @transform_9(%arg0: i32) -> (i32, i32) {
    %c0_i32 = arith.constant 0 : i32
    %c0_i32_0 = arith.constant 0 : i32
    return %arg0, %c0_i32 : i32, i32
  }
}

</mosaic_0001>

<llo_original>
// kernel: tpu_custom_call.1
$region0: #{tpu_custom_call.1}
  #allocation0 [shape = 'u32[]', space=smem, size = 0x4, offset = 0x4, fixed_abs, tag = 'smem constant byte address 0x4 - core index']
  #allocation1 [shape = 'u32[144,128]{1,0:T(1,128)}', space=vmem, size = 0x12000, scoped, tag = 'internal scratch']
  %s0 = inlined_call_operand.hbm [shape: bf16[8,8], index: 0, kind: input, shape index: {}]
  %s1 = inlined_call_operand.hbm [shape: bf16[8,32], index: 1, kind: input, shape index: {}]
  %s2 = inlined_call_operand.vmem [shape: f32[1,32], index: 2, kind: input, shape index: {}]
  %s3 = inlined_call_operand.hbm [shape: bf16[32,32], index: 3, kind: input, shape index: {}]
  %s4 = inlined_call_operand.vmem [shape: f32[1,32], index: 4, kind: input, shape index: {}]
  %s5 = inlined_call_operand.vmem [shape: bf16[32,32], index: 5, kind: input, shape index: {}]
  %s6 = inlined_call_operand.vmem [shape: f32[1,32], index: 6, kind: input, shape index: {}]
  %s7 = inlined_call_operand.hbm [shape: bf16[32,128], index: 7, kind: input, shape index: {}]
  %s8 = inlined_call_operand.vmem [shape: f32[1,128], index: 8, kind: input, shape index: {}]
  %s9 = inlined_call_operand.hbm [shape: f32[8,128], index: 9, kind: output, shape index: {}]
  %s10 = sld [smem:[#allocation0]]
  $region62: #{tpu_custom_call.1} parent=0
    _
  %s12 = ssub.s32 1, %s10
  %s13 = scalar_select 0, %s12, %s10
  $region1: #{tpu_custom_call.1} parent=0
    #allocation2 [shape = 'u8[2048]{0}', space=vmem, size = 0x800, scoped, tag = 'input window, operand 0, single buffered']
    #allocation3 [shape = 's32[1]{0}', space=sflag, size = 0x4, scoped, tag = 'scoped memory for tpu_custom_call.1']
    #allocation4 [shape = 's32[1]{0}', space=sflag, size = 0x4, scoped, tag = 'scoped memory for tpu_custom_call.1']
    #allocation5 [shape = 'u8[2048]{0}', space=vmem, size = 0x800, scoped, tag = 'input window, operand 1, single buffered']
    #allocation6 [shape = 's32[1]{0}', space=sflag, size = 0x4, scoped, tag = 'scoped memory for tpu_custom_call.1']
    #allocation7 [shape = 'u8[8192]{0}', space=vmem, size = 0x2000, scoped, tag = 'input window, operand 3, single buffered']
    #allocation8 [shape = 'u8[8192]{0}', space=vmem, size = 0x2000, scoped, tag = 'input window, operand 7, single buffered']
    #allocation9 [shape = 's32[1]{0}', space=sflag, size = 0x4, scoped, tag = 'scoped memory for tpu_custom_call.1']
    #allocation10 [shape = 'u8[4096]{0}', space=vmem, size = 0x1000, scoped, tag = 'output window, operand 0, single buffered']
    %14 = vsyncpa [#allocation3], 0
    %15 = vsyncpa [#allocation6], 0
    %16 = vsyncpa [#allocation9], 0
    %17 = vsyncpa [#allocation4], 0
    // Predicated region
    $region2: #{tpu_custom_call.1} parent=1 // pred_check
      _
    $region3: #{tpu_custom_call.1} parent=1 // pred_check_branch
      %19 = sbr.rel (0) target = $region5
    $region4: #{tpu_custom_call.1} parent=1 // pred_region
      %s21 = ssub.s32 64, 64
      %22 = vsyncadd [#allocation3], %s21
      %s24 = sshll.u32 [#allocation2], 4
      %s25 = int_to_ptr.vmem [resolvable:$true] %s24
      %27 = dma.hbm_to_vmem [thread:$0]  %s0, 64, %s25, [#allocation3]
    $region5: #{tpu_custom_call.1} parent=1 // pred_fallthru
      _
    // Predicated region
    $region6: #{tpu_custom_call.1} parent=1 // pred_check
      _
    $region7: #{tpu_custom_call.1} parent=1 // pred_check_branch
      %29 = sbr.rel (0) target = $region9
    $region8: #{tpu_custom_call.1} parent=1 // pred_region
      %s31 = ssub.s32 64, 64
      %32 = vsyncadd [#allocation6], %s31
      %s34 = sshll.u32 [#allocation5], 4
      %s35 = int_to_ptr.vmem [resolvable:$true] %s34
      %37 = dma.hbm_to_vmem [thread:$0]  %s1, 64, %s35, [#allocation6]
    $region9: #{tpu_custom_call.1} parent=1 // pred_fallthru
      _
    // Predicated region
    $region10: #{tpu_custom_call.1} parent=1 // pred_check
      _
    $region11: #{tpu_custom_call.1} parent=1 // pred_check_branch
      %39 = sbr.rel (0) target = $region13
    $region12: #{tpu_custom_call.1} parent=1 // pred_region
      _
    $region13: #{tpu_custom_call.1} parent=1 // pred_fallthru
      _
    // Predicated region
    $region14: #{tpu_custom_call.1} parent=1 // pred_check
      _
    $region15: #{tpu_custom_call.1} parent=1 // pred_check_branch
      %41 = sbr.rel (0) target = $region17
    $region16: #{tpu_custom_call.1} parent=1 // pred_region
      %s43 = ssub.s32 256, 256
      %44 = vsyncadd [#allocation6], %s43
      %s45 = sshll.u32 [#allocation7], 4
      %s46 = int_to_ptr.vmem [resolvable:$true] %s45
      %51 = dma.hbm_to_vmem [thread:$0]  %s3, 256, %s46, [#allocation6], 64, 64, 4
    $region17: #{tpu_custom_call.1} parent=1 // pred_fallthru
      _
    // Predicated region
    $region18: #{tpu_custom_call.1} parent=1 // pred_check
      _
    $region19: #{tpu_custom_call.1} parent=1 // pred_check_branch
      %53 = sbr.rel (0) target = $region21
    $region20: #{tpu_custom_call.1} parent=1 // pred_region
      _
    $region21: #{tpu_custom_call.1} parent=1 // pred_fallthru
      _
    // Predicated region
    $region22: #{tpu_custom_call.1} parent=1 // pred_check
      _
    $region23: #{tpu_custom_call.1} parent=1 // pred_check_branch
      %55 = sbr.rel (0) target = $region25
    $region24: #{tpu_custom_call.1} parent=1 // pred_region
      _
    $region25: #{tpu_custom_call.1} parent=1 // pred_fallthru
      _
    // Predicated region
    $region26: #{tpu_custom_call.1} parent=1 // pred_check
      _
    $region27: #{tpu_custom_call.1} parent=1 // pred_check_branch
      %57 = sbr.rel (0) target = $region29
    $region28: #{tpu_custom_call.1} parent=1 // pred_region
      _
    $region29: #{tpu_custom_call.1} parent=1 // pred_fallthru
      _
    // Predicated region
    $region30: #{tpu_custom_call.1} parent=1 // pred_check
      _
    $region31: #{tpu_custom_call.1} parent=1 // pred_check_branch
      %59 = sbr.rel (0) target = $region33
    $region32: #{tpu_custom_call.1} parent=1 // pred_region
      %s61 = ssub.s32 256, 256
      %62 = vsyncadd [#allocation9], %s61
      %s63 = sshll.u32 [#allocation8], 4
      %s64 = int_to_ptr.vmem [resolvable:$true] %s63
      %69 = dma.hbm_to_vmem [thread:$0]  %s7, 256, %s64, [#allocation9], 64, 64, 4
    $region33: #{tpu_custom_call.1} parent=1 // pred_fallthru
      _
    // Predicated region
    $region34: #{tpu_custom_call.1} parent=1 // pred_check
      _
    $region35: #{tpu_custom_call.1} parent=1 // pred_check_branch
      %71 = sbr.rel (0) target = $region37
    $region36: #{tpu_custom_call.1} parent=1 // pred_region
      _
    $region37: #{tpu_custom_call.1} parent=1 // pred_fallthru
      _
    // Predicated region
    $region38: #{tpu_custom_call.1} parent=1 // pred_check
      _
    $region39: #{tpu_custom_call.1} parent=1 // pred_check_branch
      %73 = sbr.rel (0) target = $region41
    $region40: #{tpu_custom_call.1} parent=1 // pred_region
      %74 = dma.done [#allocation3], 64
    $region41: #{tpu_custom_call.1} parent=1 // pred_fallthru
      _
    // Predicated region
    $region42: #{tpu_custom_call.1} parent=1 // pred_check
      _
    $region43: #{tpu_custom_call.1} parent=1 // pred_check_branch
      %76 = sbr.rel (0) target = $region45
    $region44: #{tpu_custom_call.1} parent=1 // pred_region
      %77 = dma.done [#allocation6], 64
    $region45: #{tpu_custom_call.1} parent=1 // pred_fallthru
      _
    // Predicated region
    $region46: #{tpu_custom_call.1} parent=1 // pred_check
      _
    $region47: #{tpu_custom_call.1} parent=1 // pred_check_branch
      %79 = sbr.rel (0) target = $region49
    $region48: #{tpu_custom_call.1} parent=1 // pred_region
      %80 = dma.done [#allocation6], 256
    $region49: #{tpu_custom_call.1} parent=1 // pred_fallthru
      _
    // Predicated region
    $region50: #{tpu_custom_call.1} parent=1 // pred_check
      _
    $region51: #{tpu_custom_call.1} parent=1 // pred_check_branch
      %82 = sbr.rel (0) target = $region53
    $region52: #{tpu_custom_call.1} parent=1 // pred_region
      %83 = dma.done [#allocation9], 256
    $region53: #{tpu_custom_call.1} parent=1 // pred_fallthru
      _
    %v85 = vld [vmem:[#allocation2] sm:$0xf]
    %v86 = vld [vmem:[#allocation5] sm:$0xf]
    %v87 = vld [vmem:[%s2] sm:$0x1]
    %v89 = vlaneseq
    %v90 = vshrl.u32 %v89, 7
    %v91 = vsub.s32 0, %v90
    %v92 = vrot.slane %v87, %v91
    %vm94 = vcmask 64512
    %v96 = vsel %vm94, %v85, 0
    %vm98 = vcmask 1043456
    %v100 = vsel %vm98, %v86, 0
    %102 = vmatprep.subr.bf16.mxu0 0
    %103 = vmatpush1.bf16.msra.mxu0 %v100
    %104 = vmatprep.subr.bf16.mxu0 0
    %105 = vmatpush1.bf16.msra.mxu0 0
    %106 = vmatprep.subr.bf16.mxu0 0
    %107 = vmatpush1.bf16.msra.mxu0 0
    %108 = vmatprep.subr.bf16.mxu0 0
    %109 = vmatpush1.bf16.msra.mxu0 0
    %110 = vmatprep.subr.bf16.mxu0 0
    %111 = vmatpush1.bf16.msra.mxu0 0
    %112 = vmatprep.subr.bf16.mxu0 0
    %113 = vmatpush1.bf16.msra.mxu0 0
    %114 = vmatprep.subr.bf16.mxu0 0
    %115 = vmatpush1.bf16.msra.mxu0 0
    %116 = vmatprep.subr.bf16.mxu0 0
    %117 = vmatpush1.bf16.msra.mxu0 0
    %118 = vmatprep.subr.bf16.mxu0 0
    %119 = vmatpush1.bf16.msra.mxu0 0
    %120 = vmatprep.subr.bf16.mxu0 0
    %121 = vmatpush1.bf16.msra.mxu0 0
    %122 = vmatprep.subr.bf16.mxu0 0
    %123 = vmatpush1.bf16.msra.mxu0 0
    %124 = vmatprep.subr.bf16.mxu0 0
    %125 = vmatpush1.bf16.msra.mxu0 0
    %126 = vmatprep.subr.bf16.mxu0 0
    %127 = vmatpush1.bf16.msra.mxu0 0
    %128 = vmatprep.subr.bf16.mxu0 0
    %129 = vmatpush1.bf16.msra.mxu0 0
    %130 = vmatprep.subr.bf16.mxu0 0
    %131 = vmatpush1.bf16.msra.mxu0 0
    %132 = vmatprep.subr.bf16.mxu0 0
    %133 = vmatpush1.bf16.msra.mxu0 0
    %134 = vmatprep.mubr.bf16.mxu0 0
    %135 = vmatmul.mubr.bf16.gmra.mrb[0].mxu0 %v96
    %v136 = vpop.f32.mrb[0].mxu0
    %v137 = vadd.f32 %v92, %v136
    %v138 = vpop.f32.mrb[0].mxu0
    %v139 = vpop.f32.mrb[0].mxu0
    %v140 = vpop.f32.mrb[0].mxu0
    %141 = vdwg.mxu0
    %v142 = vmax.f32 %v137, 0.0
    %v143 = vpack.c.bf16 %v142, %v142
    %v144 = vld [vmem:[#allocation7] sm:$0xf]
    %v145 = vld [vmem:[#allocation7 + $0x4] sm:$0xf]
    %v146 = vld [vmem:[#allocation7 + $0x8] sm:$0xf]
    %v147 = vld [vmem:[#allocation7 + $0xc] sm:$0xf]
    %v148 = vld [vmem:[%s4] sm:$0x1]
    %v150 = vlaneseq
    %v151 = vshrl.u32 %v150, 7
    %v152 = vsub.s32 0, %v151
    %v153 = vrot.slane %v148, %v152
    %v159 = vunpack.c.l.b16 %v144
    %v160 = vunpack.c.l.b16 %v145
    %v161 = vunpack.c.l.b16 %v146
    %v162 = vunpack.c.l.b16 %v147
    %v163 = vpack.c.b16 %v160, %v159
    %v164 = vpack.c.b16 %v162, %v161
    %vm167 = vcmask 261120
    %v169 = vsel %vm167, %v143, 0
    %171 = vmatprep.subr.bf16.mxu0 0
    %172 = vmatpush1.bf16.msra.mxu0 %v163
    %173 = vmatprep.subr.bf16.mxu0 0
    %174 = vmatpush1.bf16.msra.mxu0 %v164
    %175 = vmatprep.subr.bf16.mxu0 0
    %176 = vmatpush1.bf16.msra.mxu0 0
    %177 = vmatprep.subr.bf16.mxu0 0
    %178 = vmatpush1.bf16.msra.mxu0 0
    %179 = vmatprep.subr.bf16.mxu0 0
    %180 = vmatpush1.bf16.msra.mxu0 0
    %181 = vmatprep.subr.bf16.mxu0 0
    %182 = vmatpush1.bf16.msra.mxu0 0
    %183 = vmatprep.subr.bf16.mxu0 0
    %184 = vmatpush1.bf16.msra.mxu0 0
    %185 = vmatprep.subr.bf16.mxu0 0
    %186 = vmatpush1.bf16.msra.mxu0 0
    %187 = vmatprep.subr.bf16.mxu0 0
    %188 = vmatpush1.bf16.msra.mxu0 0
    %189 = vmatprep.subr.bf16.mxu0 0
    %190 = vmatpush1.bf16.msra.mxu0 0
    %191 = vmatprep.subr.bf16.mxu0 0
    %192 = vmatpush1.bf16.msra.mxu0 0
    %193 = vmatprep.subr.bf16.mxu0 0
    %194 = vmatpush1.bf16.msra.mxu0 0
    %195 = vmatprep.subr.bf16.mxu0 0
    %196 = vmatpush1.bf16.msra.mxu0 0
    %197 = vmatprep.subr.bf16.mxu0 0
    %198 = vmatpush1.bf16.msra.mxu0 0
    %199 = vmatprep.subr.bf16.mxu0 0
    %200 = vmatpush1.bf16.msra.mxu0 0
    %201 = vmatprep.subr.bf16.mxu0 0
    %202 = vmatpush1.bf16.msra.mxu0 0
    %203 = vmatprep.mubr.bf16.mxu0 0
    %204 = vmatmul.mubr.bf16.gmra.mrb[0].mxu0 %v169
    %v205 = vpop.f32.mrb[0].mxu0
    %v206 = vadd.f32 %v153, %v205
    %v207 = vpop.f32.mrb[0].mxu0
    %v208 = vpop.f32.mrb[0].mxu0
    %v209 = vpop.f32.mrb[0].mxu0
    %210 = vdwg.mxu0
    %v211 = vmax.f32 %v206, 0.0
    %v212 = vpack.c.bf16 %v211, %v211
    %v213 = vld [vmem:[%s5] sm:$0xf]
    %v214 = vld [vmem:[%s5 + $0x4] sm:$0xf]
    %v215 = vld [vmem:[%s5 + $0x8] sm:$0xf]
    %v216 = vld [vmem:[%s5 + $0xc] sm:$0xf]
    %v217 = vld [vmem:[%s6] sm:$0x1]
    %v219 = vlaneseq
    %v220 = vshrl.u32 %v219, 7
    %v221 = vsub.s32 0, %v220
    %v222 = vrot.slane %v217, %v221
    %v228 = vunpack.c.l.b16 %v213
    %v229 = vunpack.c.l.b16 %v214
    %v230 = vunpack.c.l.b16 %v215
    %v231 = vunpack.c.l.b16 %v216
    %v232 = vpack.c.b16 %v229, %v228
    %v233 = vpack.c.b16 %v231, %v230
    %v237 = vsel %vm167, %v212, 0
    %239 = vmatprep.subr.bf16.mxu0 0
    %240 = vmatpush1.bf16.msra.mxu0 %v232
    %241 = vmatprep.subr.bf16.mxu0 0
    %242 = vmatpush1.bf16.msra.mxu0 %v233
    %243 = vmatprep.subr.bf16.mxu0 0
    %244 = vmatpush1.bf16.msra.mxu0 0
    %245 = vmatprep.subr.bf16.mxu0 0
    %246 = vmatpush1.bf16.msra.mxu0 0
    %247 = vmatprep.subr.bf16.mxu0 0
    %248 = vmatpush1.bf16.msra.mxu0 0
    %249 = vmatprep.subr.bf16.mxu0 0
    %250 = vmatpush1.bf16.msra.mxu0 0
    %251 = vmatprep.subr.bf16.mxu0 0
    %252 = vmatpush1.bf16.msra.mxu0 0
    %253 = vmatprep.subr.bf16.mxu0 0
    %254 = vmatpush1.bf16.msra.mxu0 0
    %255 = vmatprep.subr.bf16.mxu0 0
    %256 = vmatpush1.bf16.msra.mxu0 0
    %257 = vmatprep.subr.bf16.mxu0 0
    %258 = vmatpush1.bf16.msra.mxu0 0
    %259 = vmatprep.subr.bf16.mxu0 0
    %260 = vmatpush1.bf16.msra.mxu0 0
    %261 = vmatprep.subr.bf16.mxu0 0
    %262 = vmatpush1.bf16.msra.mxu0 0
    %263 = vmatprep.subr.bf16.mxu0 0
    %264 = vmatpush1.bf16.msra.mxu0 0
    %265 = vmatprep.subr.bf16.mxu0 0
    %266 = vmatpush1.bf16.msra.mxu0 0
    %267 = vmatprep.subr.bf16.mxu0 0
    %268 = vmatpush1.bf16.msra.mxu0 0
    %269 = vmatprep.subr.bf16.mxu0 0
    %270 = vmatpush1.bf16.msra.mxu0 0
    %271 = vmatprep.mubr.bf16.mxu0 0
    %272 = vmatmul.mubr.bf16.gmra.mrb[0].mxu0 %v237
    %v273 = vpop.f32.mrb[0].mxu0
    %v274 = vadd.f32 %v222, %v273
    %v275 = vpop.f32.mrb[0].mxu0
    %v276 = vpop.f32.mrb[0].mxu0
    %v277 = vpop.f32.mrb[0].mxu0
    %278 = vdwg.mxu0
    %v279 = vmax.f32 %v274, 0.0
    %v280 = vpack.c.bf16 %v279, %v279
    %v281 = vld [vmem:[#allocation8] sm:$0xf]
    %v282 = vld [vmem:[#allocation8 + $0x4] sm:$0xf]
    %v283 = vld [vmem:[#allocation8 + $0x8] sm:$0xf]
    %v284 = vld [vmem:[#allocation8 + $0xc] sm:$0xf]
    %v285 = vld [vmem:[%s8] sm:$0x1]
    %v287 = vlaneseq
    %v288 = vshrl.u32 %v287, 7
    %v289 = vsub.s32 0, %v288
    %v290 = vrot.slane %v285, %v289
    %v296 = vunpack.c.l.b16 %v281
    %v297 = vunpack.c.l.b16 %v282
    %v298 = vunpack.c.l.b16 %v283
    %v299 = vunpack.c.l.b16 %v284
    %v300 = vpack.c.b16 %v297, %v296
    %v301 = vpack.c.b16 %v299, %v298
    %v305 = vsel %vm167, %v280, 0
    %307 = vmatprep.subr.bf16.mxu0 0
    %308 = vmatpush1.bf16.msra.mxu0 %v300
    %309 = vmatprep.subr.bf16.mxu0 0
    %310 = vmatpush1.bf16.msra.mxu0 %v301
    %311 = vmatprep.subr.bf16.mxu0 0
    %312 = vmatpush1.bf16.msra.mxu0 0
    %313 = vmatprep.subr.bf16.mxu0 0
    %314 = vmatpush1.bf16.msra.mxu0 0
    %315 = vmatprep.subr.bf16.mxu0 0
    %316 = vmatpush1.bf16.msra.mxu0 0
    %317 = vmatprep.subr.bf16.mxu0 0
    %318 = vmatpush1.bf16.msra.mxu0 0
    %319 = vmatprep.subr.bf16.mxu0 0
    %320 = vmatpush1.bf16.msra.mxu0 0
    %321 = vmatprep.subr.bf16.mxu0 0
    %322 = vmatpush1.bf16.msra.mxu0 0
    %323 = vmatprep.subr.bf16.mxu0 0
    %324 = vmatpush1.bf16.msra.mxu0 0
    %325 = vmatprep.subr.bf16.mxu0 0
    %326 = vmatpush1.bf16.msra.mxu0 0
    %327 = vmatprep.subr.bf16.mxu0 0
    %328 = vmatpush1.bf16.msra.mxu0 0
    %329 = vmatprep.subr.bf16.mxu0 0
    %330 = vmatpush1.bf16.msra.mxu0 0
    %331 = vmatprep.subr.bf16.mxu0 0
    %332 = vmatpush1.bf16.msra.mxu0 0
    %333 = vmatprep.subr.bf16.mxu0 0
    %334 = vmatpush1.bf16.msra.mxu0 0
    %335 = vmatprep.subr.bf16.mxu0 0
    %336 = vmatpush1.bf16.msra.mxu0 0
    %337 = vmatprep.subr.bf16.mxu0 0
    %338 = vmatpush1.bf16.msra.mxu0 0
    %339 = vmatprep.mubr.bf16.mxu0 0
    %340 = vmatmul.mubr.bf16.gmra.mrb[0].mxu0 %v305
    %v341 = vpop.f32.mrb[0].mxu0
    %v342 = vadd.f32 %v290, %v341
    %v343 = vpop.f32.mrb[0].mxu0
    %v344 = vpop.f32.mrb[0].mxu0
    %v345 = vpop.f32.mrb[0].mxu0
    %346 = vdwg.mxu0
    %347 = vst [vmem:[#allocation10] sm:$0xff] %v342
    // Predicated region
    $region54: #{tpu_custom_call.1} parent=1 // pred_check
      _
    $region55: #{tpu_custom_call.1} parent=1 // pred_check_branch
      %349 = sbr.rel (0) target = $region57
    $region56: #{tpu_custom_call.1} parent=1 // pred_region
      %s351 = ssub.s32 128, 128
      %352 = vsyncadd [#allocation4], %s351
      %s354 = sshll.u32 [#allocation10], 4
      %s355 = int_to_ptr.vmem [resolvable:$true] %s354
      %357 = dma.vmem_to_hbm [thread:$0]  %s355, 128, %s9, [#allocation4]
    $region57: #{tpu_custom_call.1} parent=1 // pred_fallthru
      _
    // Predicated region
    $region58: #{tpu_custom_call.1} parent=1 // pred_check
      _
    $region59: #{tpu_custom_call.1} parent=1 // pred_check_branch
      %359 = sbr.rel (0) target = $region61
    $region60: #{tpu_custom_call.1} parent=1 // pred_region
      %360 = dma.done [#allocation4], 128
    $region61: #{tpu_custom_call.1} parent=1 // pred_fallthru
      _
    %361 = vsyncpa [#allocation3], 1
    %362 = vsyncpa [#allocation6], 1
    %363 = vsyncpa [#allocation9], 1
    %364 = vsyncpa [#allocation4], 1

</llo_original>
